<compile_context>
chip_gen: v7x
topology: tpu7x:2x2x1
jax: 0.10.0
libtpu: 0.0.40
codegen_flags: <defaults>
</compile_context>

<pallas_src>
import functools

import jax
import jax.numpy as jnp
from jax.experimental import pallas as pl
from jax.experimental.pallas import tpu as pltpu


def _bert_output_kernel(x_ref, res_ref, w_ref, b_ref, g_ref, beta_ref, o_ref,
                        *, eps):
    # x_ref:    (TILE_M, I)  dense-input rows
    # res_ref:  (TILE_M, H)  residual (att_out) rows
    # w_ref:    (H, I)       torch Linear weight (out_features, in_features)
    # b_ref:    (1, H)       dense bias
    # g_ref:    (1, H)       LayerNorm weight (gamma)
    # beta_ref: (1, H)       LayerNorm bias (beta)
    x = x_ref[...]
    w = w_ref[...]
    # dense: contract x's in-dim with w's in-dim (no w.T), f32 accumulation
    y = jax.lax.dot_general(
        x, w,
        dimension_numbers=(((1,), (1,)), ((), ())),
        preferred_element_type=jnp.float32,
    )
    y = y + b_ref[...].astype(jnp.float32)
    # TODO(synk): dropout treated as identity (eval/inference); training-mode
    # dropout would draw a mask via pltpu.prng_seed / pltpu.prng_random_bits.
    y = y + res_ref[...].astype(jnp.float32)

    # LayerNorm over the hidden (lane) axis, entirely in f32.
    mean = jnp.mean(y, axis=-1, keepdims=True)
    cen = y - mean
    var = jnp.mean(cen * cen, axis=-1, keepdims=True)
    ynorm = cen * jax.lax.rsqrt(var + eps)
    out = ynorm * g_ref[...].astype(jnp.float32) + beta_ref[...].astype(jnp.float32)
    o_ref[...] = out.astype(o_ref.dtype)


def _pick_row_tile(m, max_tile):
    """Largest multiple of 8 that divides m and is <= max_tile; else full m."""
    if m % 8 != 0:
        return m
    t = min(max_tile, m)
    t -= t % 8
    while t >= 8:
        if m % t == 0:
            return t
        t -= 8
    return m


def bert_output(intermediate_out, att_out, weight, bias, ln_weight, ln_bias,
                *, eps=1e-12, max_row_tile=256, matmul_dtype=None):
    """Fused BertOutput forward.

    intermediate_out: [B, S, I]  (I = intermediate_size)
    att_out:          [B, S, H]  (H = emb_size)
    weight:           [H, I]     torch nn.Linear weight (out, in)
    bias, ln_weight, ln_bias: [H]
    returns:          [B, S, H]
    """
    B, S, I = intermediate_out.shape
    H = att_out.shape[-1]
    M = B * S

    x2 = intermediate_out.reshape(M, I)
    r2 = att_out.reshape(M, H)
    w = weight
    if matmul_dtype is not None:
        # bf16 MXU operands (v6e / v7x): cast once in the wrapper; the kernel
        # keeps f32 accumulation and a f32 bias/residual/LayerNorm epilogue.
        x2 = x2.astype(matmul_dtype)
        w = w.astype(matmul_dtype)

    tm = _pick_row_tile(M, max_row_tile)
    grid = (M // tm,)

    out2 = pl.pallas_call(
        functools.partial(_bert_output_kernel, eps=eps),
        out_shape=jax.ShapeDtypeStruct((M, H), att_out.dtype),
        grid_spec=pl.GridSpec(
            grid=grid,
            in_specs=[
                pl.BlockSpec((tm, I), lambda i: (i, 0)),   # x rows (pipelined)
                pl.BlockSpec((tm, H), lambda i: (i, 0)),   # residual rows
                pl.BlockSpec((H, I), lambda i: (0, 0)),    # weight, VMEM-resident
                pl.BlockSpec((1, H), lambda i: (0, 0)),    # bias
                pl.BlockSpec((1, H), lambda i: (0, 0)),    # LN gamma
                pl.BlockSpec((1, H), lambda i: (0, 0)),    # LN beta
            ],
            out_specs=pl.BlockSpec((tm, H), lambda i: (i, 0)),
        ),
        compiler_params=pltpu.CompilerParams(
            # row-tile axis is independent -> megacore-shardable on v7x
            dimension_semantics=("parallel",),
            # fits under v7x's 64 MiB physical VMEM while allowing more than
            # the 32 MiB scoped default for real BERT shapes (H=1024, I=4096)
            vmem_limit_bytes=48 * 1024 * 1024,
        ),
    )(x2, r2, w, bias.reshape(1, H), ln_weight.reshape(1, H),
      ln_bias.reshape(1, H))

    return out2.reshape(B, S, H)


if __name__ == "__main__":
    # Small shapes: batch=2, seq=8, emb_size=32, intermediate_size=4*32=128
    B, S, H = 2, 8, 32
    I = 4 * H
    eps = 1e-12

    key = jax.random.PRNGKey(0)
    k_x, k_r, k_w, k_b, k_g, k_be = jax.random.split(key, 6)

    intermediate_out = jax.random.normal(k_x, (B, S, I), dtype=jnp.float32)
    att_out = jax.random.normal(k_r, (B, S, H), dtype=jnp.float32)
    weight = jax.random.normal(k_w, (H, I), dtype=jnp.float32) * 0.02
    bias = jax.random.normal(k_b, (H,), dtype=jnp.float32) * 0.02
    ln_weight = 1.0 + 0.1 * jax.random.normal(k_g, (H,), dtype=jnp.float32)
    ln_bias = 0.1 * jax.random.normal(k_be, (H,), dtype=jnp.float32)

    out = bert_output(intermediate_out, att_out, weight, bias,
                      ln_weight, ln_bias, eps=eps)
    out = jax.block_until_ready(out)

    # plain-JAX reference (dropout = identity in eval mode)
    y = intermediate_out @ weight.T + bias
    y = y + att_out
    mean = y.mean(axis=-1, keepdims=True)
    var = ((y - mean) ** 2).mean(axis=-1, keepdims=True)
    ref = (y - mean) / jnp.sqrt(var + eps) * ln_weight + ln_bias

    assert out.shape == (B, S, H)
    assert jnp.allclose(out, ref, atol=1e-5, rtol=1e-5), (
        float(jnp.max(jnp.abs(out - ref))))

    print("KERNEL_OK")
</pallas_src>

<mosaic_0001>
module attributes {stable_mosaic.version = 11 : i64} {
  func.func @_bert_output_kernel(%arg0: i32, %arg1: memref<16x128xf32, #tpu.memory_space<vmem>>, %arg2: memref<16x32xf32, #tpu.memory_space<vmem>>, %arg3: memref<32x128xf32, #tpu.memory_space<vmem>>, %arg4: memref<1x32xf32, #tpu.memory_space<vmem>>, %arg5: memref<1x32xf32, #tpu.memory_space<vmem>>, %arg6: memref<1x32xf32, #tpu.memory_space<vmem>>, %arg7: memref<16x32xf32, #tpu.memory_space<vmem>>) attributes {dimension_semantics = [#tpu.dimension_semantics<parallel>], iteration_bounds = array<i64: 1>, scalar_prefetch = 0 : i64, scratch_operands = 0 : i64, tpu.core_type = #tpu.core_type<tc>, window_params = [{transform_indices = @transform_0, window_bounds = array<i64: 16, 128>}, {transform_indices = @transform_1, window_bounds = array<i64: 16, 32>}, {pipeline_mode = #tpu.pipeline_mode<synchronous>, transform_indices = @transform_2, window_bounds = array<i64: 32, 128>}, {pipeline_mode = #tpu.pipeline_mode<synchronous>, transform_indices = @transform_3, window_bounds = array<i64: 1, 32>}, {pipeline_mode = #tpu.pipeline_mode<synchronous>, transform_indices = @transform_4, window_bounds = array<i64: 1, 32>}, {pipeline_mode = #tpu.pipeline_mode<synchronous>, transform_indices = @transform_5, window_bounds = array<i64: 1, 32>}, {transform_indices = @transform_6, window_bounds = array<i64: 16, 32>}]} {
    %c0 = arith.constant 0 : index
    %c0_0 = arith.constant 0 : index
    %0 = vector.load %arg1[%c0, %c0_0] : memref<16x128xf32, #tpu.memory_space<vmem>>, vector<16x128xf32>
    %c0_1 = arith.constant 0 : index
    %c0_2 = arith.constant 0 : index
    %1 = vector.load %arg3[%c0_1, %c0_2] : memref<32x128xf32, #tpu.memory_space<vmem>>, vector<32x128xf32>
    %cst = arith.constant dense<0.000000e+00> : vector<16x32xf32>
    %2 = tpu.matmul %0, %1, %cst {dimension_numbers = #tpu.dot_dimension_numbers<[1], [1], [0], [0], [0, 0, 1, 0], [], []>} : vector<16x128xf32>, vector<32x128xf32>, vector<16x32xf32> -> vector<16x32xf32>
    %c0_3 = arith.constant 0 : index
    %c0_4 = arith.constant 0 : index
    %3 = vector.load %arg4[%c0_3, %c0_4] : memref<1x32xf32, #tpu.memory_space<vmem>>, vector<1x32xf32>
    %4 = vector.broadcast %3 : vector<1x32xf32> to vector<16x32xf32>
    %5 = arith.addf %2, %4 : vector<16x32xf32>
    %c0_5 = arith.constant 0 : index
    %c0_6 = arith.constant 0 : index
    %6 = vector.load %arg2[%c0_5, %c0_6] : memref<16x32xf32, #tpu.memory_space<vmem>>, vector<16x32xf32>
    %7 = arith.addf %5, %6 : vector<16x32xf32>
    %cst_7 = arith.constant dense<0.000000e+00> : vector<16xf32>
    %8 = vector.multi_reduction <add>, %7, %cst_7 [1] : vector<16x32xf32> to vector<16xf32>
    %9 = vector.shape_cast %8 : vector<16xf32> to vector<16x1xf32>
    %cst_8 = arith.constant 3.200000e+01 : f32
    %10 = vector.broadcast %cst_8 : f32 to vector<16x1xf32>
    %11 = arith.divf %9, %10 : vector<16x1xf32>
    %12 = vector.broadcast %11 : vector<16x1xf32> to vector<16x32xf32>
    %13 = arith.subf %7, %12 : vector<16x32xf32>
    %14 = arith.mulf %13, %13 : vector<16x32xf32>
    %cst_9 = arith.constant dense<0.000000e+00> : vector<16xf32>
    %15 = vector.multi_reduction <add>, %14, %cst_9 [1] : vector<16x32xf32> to vector<16xf32>
    %16 = vector.shape_cast %15 : vector<16xf32> to vector<16x1xf32>
    %cst_10 = arith.constant 3.200000e+01 : f32
    %17 = vector.broadcast %cst_10 : f32 to vector<16x1xf32>
    %18 = arith.divf %16, %17 : vector<16x1xf32>
    %cst_11 = arith.constant 9.99999996E-13 : f32
    %19 = vector.broadcast %cst_11 : f32 to vector<16x1xf32>
    %20 = arith.addf %18, %19 : vector<16x1xf32>
    %21 = math.rsqrt %20 : vector<16x1xf32>
    %22 = vector.broadcast %21 : vector<16x1xf32> to vector<16x32xf32>
    %23 = arith.mulf %13, %22 : vector<16x32xf32>
    %c0_12 = arith.constant 0 : index
    %c0_13 = arith.constant 0 : index
    %24 = vector.load %arg5[%c0_12, %c0_13] : memref<1x32xf32, #tpu.memory_space<vmem>>, vector<1x32xf32>
    %25 = vector.broadcast %24 : vector<1x32xf32> to vector<16x32xf32>
    %26 = arith.mulf %23, %25 : vector<16x32xf32>
    %c0_14 = arith.constant 0 : index
    %c0_15 = arith.constant 0 : index
    %27 = vector.load %arg6[%c0_14, %c0_15] : memref<1x32xf32, #tpu.memory_space<vmem>>, vector<1x32xf32>
    %28 = vector.broadcast %27 : vector<1x32xf32> to vector<16x32xf32>
    %29 = arith.addf %26, %28 : vector<16x32xf32>
    %c0_16 = arith.constant 0 : index
    %c0_17 = arith.constant 0 : index
    %30 = vector.load %arg7[%c0_16, %c0_17] : memref<16x32xf32, #tpu.memory_space<vmem>>, vector<16x32xf32>
    tpu.vector_store %arg7[%c0_16, %c0_17], %29 {strides = array<i32>} : memref<16x32xf32, #tpu.memory_space<vmem>>, vector<16x32xf32>,
    return
  }
  func.func @transform_0(%arg0: i32) -> (i32, i32) {
    %c0_i32 = arith.constant 0 : i32
    %c0_i32_0 = arith.constant 0 : i32
    return %arg0, %c0_i32 : i32, i32
  }
  func.func @transform_1(%arg0: i32) -> (i32, i32) {
    %c0_i32 = arith.constant 0 : i32
    %c0_i32_0 = arith.constant 0 : i32
    return %arg0, %c0_i32 : i32, i32
  }
  func.func @transform_2(%arg0: i32) -> (i32, i32) {
    %c0_i32 = arith.constant 0 : i32
    %c0_i32_0 = arith.constant 0 : i32
    %c0_i32_1 = arith.constant 0 : i32
    return %c0_i32, %c0_i32_0 : i32, i32
  }
  func.func @transform_3(%arg0: i32) -> (i32, i32) {
    %c0_i32 = arith.constant 0 : i32
    %c0_i32_0 = arith.constant 0 : i32
    %c0_i32_1 = arith.constant 0 : i32
    return %c0_i32, %c0_i32_0 : i32, i32
  }
  func.func @transform_4(%arg0: i32) -> (i32, i32) {
    %c0_i32 = arith.constant 0 : i32
    %c0_i32_0 = arith.constant 0 : i32
    %c0_i32_1 = arith.constant 0 : i32
    return %c0_i32, %c0_i32_0 : i32, i32
  }
  func.func @transform_5(%arg0: i32) -> (i32, i32) {
    %c0_i32 = arith.constant 0 : i32
    %c0_i32_0 = arith.constant 0 : i32
    %c0_i32_1 = arith.constant 0 : i32
    return %c0_i32, %c0_i32_0 : i32, i32
  }
  func.func @transform_6(%arg0: i32) -> (i32, i32) {
    %c0_i32 = arith.constant 0 : i32
    %c0_i32_0 = arith.constant 0 : i32
    return %arg0, %c0_i32 : i32, i32
  }
}

</mosaic_0001>

<llo_original>
// kernel: tpu_custom_call.1
$region0: #{tpu_custom_call.1}
  #allocation0 [shape = 'u32[]', space=smem, size = 0x4, offset = 0x4, fixed_abs, tag = 'smem constant byte address 0x4 - core index']
  #allocation1 [shape = 'u32[144,128]{1,0:T(1,128)}', space=vmem, size = 0x12000, scoped, tag = 'internal scratch']
  %s0 = inlined_call_operand.hbm [shape: f32[16,128], index: 0, kind: input, shape index: {}]
  %s1 = inlined_call_operand.hbm [shape: f32[16,32], index: 1, kind: input, shape index: {}]
  %s2 = inlined_call_operand.hbm [shape: f32[32,128], index: 2, kind: input, shape index: {}]
  %s3 = inlined_call_operand.vmem [shape: f32[1,32], index: 3, kind: input, shape index: {}]
  %s4 = inlined_call_operand.vmem [shape: f32[1,32], index: 4, kind: input, shape index: {}]
  %s5 = inlined_call_operand.vmem [shape: f32[1,32], index: 5, kind: input, shape index: {}]
  %s6 = inlined_call_operand.hbm [shape: f32[16,32], index: 6, kind: output, shape index: {}]
  %s7 = sld [smem:[#allocation0]]
  $region46: #{tpu_custom_call.1} parent=0
    _
  %s9 = ssub.s32 1, %s7
  %s10 = scalar_select 0, %s9, %s7
  $region1: #{tpu_custom_call.1} parent=0
    #allocation2 [shape = 'u8[8192]{0}', space=vmem, size = 0x2000, scoped, tag = 'input window, operand 0, single buffered']
    #allocation3 [shape = 's32[1]{0}', space=sflag, size = 0x4, scoped, tag = 'scoped memory for tpu_custom_call.1']
    #allocation4 [shape = 's32[1]{0}', space=sflag, size = 0x4, scoped, tag = 'scoped memory for tpu_custom_call.1']
    #allocation5 [shape = 'u8[8192]{0}', space=vmem, size = 0x2000, scoped, tag = 'input window, operand 1, single buffered']
    #allocation6 [shape = 's32[1]{0}', space=sflag, size = 0x4, scoped, tag = 'scoped memory for tpu_custom_call.1']
    #allocation7 [shape = 'u8[16384]{0}', space=vmem, size = 0x4000, scoped, tag = 'input window, operand 2, single buffered']
    #allocation8 [shape = 'u8[8192]{0}', space=vmem, size = 0x2000, scoped, tag = 'output window, operand 0, single buffered']
    %11 = vsyncpa [#allocation3], 0
    %12 = vsyncpa [#allocation6], 0
    %13 = vsyncpa [#allocation4], 0
    // Predicated region
    $region2: #{tpu_custom_call.1} parent=1 // pred_check
      _
    $region3: #{tpu_custom_call.1} parent=1 // pred_check_branch
      %15 = sbr.rel (0) target = $region5
    $region4: #{tpu_custom_call.1} parent=1 // pred_region
      %s17 = ssub.s32 256, 256
      %18 = vsyncadd [#allocation3], %s17
      %s19 = sshll.u32 [#allocation2], 4
      %s20 = int_to_ptr.vmem [resolvable:$true] %s19
      %25 = dma.hbm_to_vmem [thread:$0]  %s0, 256, %s20, [#allocation3], 128, 128, 8
    $region5: #{tpu_custom_call.1} parent=1 // pred_fallthru
      _
    // Predicated region
    $region6: #{tpu_custom_call.1} parent=1 // pred_check
      _
    $region7: #{tpu_custom_call.1} parent=1 // pred_check_branch
      %27 = sbr.rel (0) target = $region9
    $region8: #{tpu_custom_call.1} parent=1 // pred_region
      %s29 = ssub.s32 256, 256
      %30 = vsyncadd [#allocation6], %s29
      %s31 = sshll.u32 [#allocation5], 4
      %s32 = int_to_ptr.vmem [resolvable:$true] %s31
      %37 = dma.hbm_to_vmem [thread:$0]  %s1, 256, %s32, [#allocation6], 128, 128, 8
    $region9: #{tpu_custom_call.1} parent=1 // pred_fallthru
      _
    // Predicated region
    $region10: #{tpu_custom_call.1} parent=1 // pred_check
      _
    $region11: #{tpu_custom_call.1} parent=1 // pred_check_branch
      %39 = sbr.rel (0) target = $region13
    $region12: #{tpu_custom_call.1} parent=1 // pred_region
      %s41 = ssub.s32 512, 512
      %42 = vsyncadd [#allocation6], %s41
      %s43 = sshll.u32 [#allocation7], 4
      %s44 = int_to_ptr.vmem [resolvable:$true] %s43
      %49 = dma.hbm_to_vmem [thread:$0]  %s2, 512, %s44, [#allocation6], 128, 128, 8
    $region13: #{tpu_custom_call.1} parent=1 // pred_fallthru
      _
    // Predicated region
    $region14: #{tpu_custom_call.1} parent=1 // pred_check
      _
    $region15: #{tpu_custom_call.1} parent=1 // pred_check_branch
      %51 = sbr.rel (0) target = $region17
    $region16: #{tpu_custom_call.1} parent=1 // pred_region
      _
    $region17: #{tpu_custom_call.1} parent=1 // pred_fallthru
      _
    // Predicated region
    $region18: #{tpu_custom_call.1} parent=1 // pred_check
      _
    $region19: #{tpu_custom_call.1} parent=1 // pred_check_branch
      %53 = sbr.rel (0) target = $region21
    $region20: #{tpu_custom_call.1} parent=1 // pred_region
      _
    $region21: #{tpu_custom_call.1} parent=1 // pred_fallthru
      _
    // Predicated region
    $region22: #{tpu_custom_call.1} parent=1 // pred_check
      _
    $region23: #{tpu_custom_call.1} parent=1 // pred_check_branch
      %55 = sbr.rel (0) target = $region25
    $region24: #{tpu_custom_call.1} parent=1 // pred_region
      _
    $region25: #{tpu_custom_call.1} parent=1 // pred_fallthru
      _
    // Predicated region
    $region26: #{tpu_custom_call.1} parent=1 // pred_check
      _
    $region27: #{tpu_custom_call.1} parent=1 // pred_check_branch
      %57 = sbr.rel (0) target = $region29
    $region28: #{tpu_custom_call.1} parent=1 // pred_region
      %58 = dma.done [#allocation3], 256
    $region29: #{tpu_custom_call.1} parent=1 // pred_fallthru
      _
    // Predicated region
    $region30: #{tpu_custom_call.1} parent=1 // pred_check
      _
    $region31: #{tpu_custom_call.1} parent=1 // pred_check_branch
      %60 = sbr.rel (0) target = $region33
    $region32: #{tpu_custom_call.1} parent=1 // pred_region
      %61 = dma.done [#allocation6], 256
    $region33: #{tpu_custom_call.1} parent=1 // pred_fallthru
      _
    // Predicated region
    $region34: #{tpu_custom_call.1} parent=1 // pred_check
      _
    $region35: #{tpu_custom_call.1} parent=1 // pred_check_branch
      %63 = sbr.rel (0) target = $region37
    $region36: #{tpu_custom_call.1} parent=1 // pred_region
      %64 = dma.done [#allocation6], 512
    $region37: #{tpu_custom_call.1} parent=1 // pred_fallthru
      _
    %v65 = vld [vmem:[#allocation2] sm:$0xff]
    %v66 = vld [vmem:[#allocation2 + $0x8] sm:$0xff]
    %v67 = vld [vmem:[#allocation7] sm:$0xff]
    %v68 = vld [vmem:[#allocation7 + $0x8] sm:$0xff]
    %v69 = vld [vmem:[#allocation7 + $0x10] sm:$0xff]
    %v70 = vld [vmem:[#allocation7 + $0x18] sm:$0xff]
    %v71 = vld [vmem:[%s3] sm:$0x1]
    %v73 = vlaneseq
    %v74 = vshrl.u32 %v73, 7
    %v75 = vsub.s32 0, %v74
    %v76 = vrot.slane %v71, %v75
    %78 = vmatprep.subr.mxu0 0.0
    %79 = vmatpush1.xpose.msra.mxu0 %v67
    %80 = vmatprep.subr.mxu0 0.0
    %81 = vmatpush1.xpose.msra.mxu0 %v68
    %82 = vmatprep.subr.mxu0 0.0
    %83 = vmatpush1.xpose.msra.mxu0 %v69
    %84 = vmatprep.subr.mxu0 0.0
    %85 = vmatpush1.xpose.msra.mxu0 %v70
    %86 = vmatprep.subr.mxu0 0.0
    %87 = vmatpush1.xpose.msra.mxu0 0.0
    %88 = vmatprep.subr.mxu0 0.0
    %89 = vmatpush1.xpose.msra.mxu0 0.0
    %90 = vmatprep.subr.mxu0 0.0
    %91 = vmatpush1.xpose.msra.mxu0 0.0
    %92 = vmatprep.subr.mxu0 0.0
    %93 = vmatpush1.xpose.msra.mxu0 0.0
    %94 = vmatprep.subr.mxu0 0.0
    %95 = vmatpush1.xpose.msra.mxu0 0.0
    %96 = vmatprep.subr.mxu0 0.0
    %97 = vmatpush1.xpose.msra.mxu0 0.0
    %98 = vmatprep.subr.mxu0 0.0
    %99 = vmatpush1.xpose.msra.mxu0 0.0
    %100 = vmatprep.subr.mxu0 0.0
    %101 = vmatpush1.xpose.msra.mxu0 0.0
    %102 = vmatprep.subr.mxu0 0.0
    %103 = vmatpush1.xpose.msra.mxu0 0.0
    %104 = vmatprep.subr.mxu0 0.0
    %105 = vmatpush1.xpose.msra.mxu0 0.0
    %106 = vmatprep.subr.mxu0 0.0
    %107 = vmatpush1.xpose.msra.mxu0 0.0
    %108 = vmatprep.subr.mxu0 0.0
    %109 = vmatpush1.xpose.msra.mxu0 0.0
    %110 = vmatprep.subr.mxu0 0.0
    %111 = vmatpush1.xpose.msra.mxu0 0.0
    %112 = vmatprep.subr.mxu0 0.0
    %113 = vmatpush1.xpose.msra.mxu0 0.0
    %114 = vmatprep.subr.mxu0 0.0
    %115 = vmatpush1.xpose.msra.mxu0 0.0
    %116 = vmatprep.subr.mxu0 0.0
    %117 = vmatpush1.xpose.msra.mxu0 0.0
    %118 = vmatprep.subr.mxu0 0.0
    %119 = vmatpush1.xpose.msra.mxu0 0.0
    %120 = vmatprep.subr.mxu0 0.0
    %121 = vmatpush1.xpose.msra.mxu0 0.0
    %122 = vmatprep.subr.mxu0 0.0
    %123 = vmatpush1.xpose.msra.mxu0 0.0
    %124 = vmatprep.subr.mxu0 0.0
    %125 = vmatpush1.xpose.msra.mxu0 0.0
    %126 = vmatprep.subr.mxu0 0.0
    %127 = vmatpush1.xpose.msra.mxu0 0.0
    %128 = vmatprep.subr.mxu0 0.0
    %129 = vmatpush1.xpose.msra.mxu0 0.0
    %130 = vmatprep.subr.mxu0 0.0
    %131 = vmatpush1.xpose.msra.mxu0 0.0
    %132 = vmatprep.subr.mxu0 0.0
    %133 = vmatpush1.xpose.msra.mxu0 0.0
    %134 = vmatprep.subr.mxu0 0.0
    %135 = vmatpush1.xpose.msra.mxu0 0.0
    %136 = vmatprep.subr.mxu0 0.0
    %137 = vmatpush1.xpose.msra.mxu0 0.0
    %138 = vmatprep.subr.mxu0 0.0
    %139 = vmatpush1.xpose.msra.mxu0 0.0
    %140 = vmatprep.subr.mxu0 0.0
    %141 = vmatpush1.xpose.msra.mxu0 0.0
    %142 = vmatprep.mubr.f32.mxu0 0.0
    %143 = vmatmul.mubr.f32.gmra.mrb[0].mxu0 %v65
    %v144 = vpop.f32.mrb[0].mxu0
    %v145 = vadd.f32 %v76, %v144
    %v146 = vpop.f32.mrb[0].mxu0
    %147 = vmatprep.mubr.f32.mxu0 0.0
    %148 = vmatmul.mubr.f32.gmra.mrb[0].mxu0 %v66
    %v149 = vpop.f32.mrb[0].mxu0
    %v150 = vadd.f32 %v76, %v149
    %v151 = vpop.f32.mrb[0].mxu0
    %152 = vdwg.mxu0
    %v153 = vld [vmem:[#allocation5] sm:$0xff]
    %v154 = vld [vmem:[#allocation5 + $0x8] sm:$0xff]
    %v155 = vadd.f32 %v145, %v153
    %v156 = vadd.f32 %v150, %v154
    %vm157 = vcmask 261120
    %v158 = vsel %vm157, %v155, 0.0
    %159 = vadd.xlane.f32.xlu0 %v158
    %v160 = vpop.xlane.xlu0 %159
    %v161 = vsel %vm157, %v156, 0.0
    %162 = vadd.xlane.f32.xlu0 %v161
    %v163 = vpop.xlane.xlu0 %162
    %v164 = vrcp.pop 32.0
    %v165 = vmul.f32 %v160, %v164
    %v166 = vmul.f32 %v163, %v164
    %v167 = vsub.f32 %v155, %v165
    %v168 = vsub.f32 %v156, %v166
    %v169 = vmul.f32 %v167, %v167
    %v170 = vmul.f32 %v168, %v168
    %v171 = vsel %vm157, %v169, 0.0
    %172 = vadd.xlane.f32.xlu0 %v171
    %v173 = vpop.xlane.xlu0 %172
    %v174 = vsel %vm157, %v170, 0.0
    %175 = vadd.xlane.f32.xlu0 %v174
    %v176 = vpop.xlane.xlu0 %175
    %v177 = vmul.f32 %v173, %v164
    %v178 = vmul.f32 %v176, %v164
    %v179 = vadd.f32 %v177, 1e-12
    %v180 = vadd.f32 %v178, 1e-12
    %v181 = vrsqrt.pop %v179
    %v182 = vrsqrt.pop %v180
    %v183 = vmul.f32 %v167, %v181
    %v184 = vmul.f32 %v168, %v182
    %v185 = vld [vmem:[%s4] sm:$0x1]
    %v187 = vlaneseq
    %v188 = vshrl.u32 %v187, 7
    %v189 = vsub.s32 0, %v188
    %v190 = vrot.slane %v185, %v189
    %v192 = vmul.f32 %v183, %v190
    %v193 = vmul.f32 %v184, %v190
    %v194 = vld [vmem:[%s5] sm:$0x1]
    %v196 = vlaneseq
    %v197 = vshrl.u32 %v196, 7
    %v198 = vsub.s32 0, %v197
    %v199 = vrot.slane %v194, %v198
    %v201 = vadd.f32 %v192, %v199
    %v202 = vadd.f32 %v193, %v199
    %203 = vst.msk [vmem:[#allocation8] sm:$0xff] %vm157, %v201
    %204 = vst.msk [vmem:[#allocation8 + $0x8] sm:$0xff] %vm157, %v202
    // Predicated region
    $region38: #{tpu_custom_call.1} parent=1 // pred_check
      _
    $region39: #{tpu_custom_call.1} parent=1 // pred_check_branch
      %206 = sbr.rel (0) target = $region41
    $region40: #{tpu_custom_call.1} parent=1 // pred_region
      %s208 = ssub.s32 256, 256
      %209 = vsyncadd [#allocation4], %s208
      %s210 = sshll.u32 [#allocation8], 4
      %s211 = int_to_ptr.vmem [resolvable:$true] %s210
      %216 = dma.vmem_to_hbm [thread:$0]  %s211, 256, %s6, [#allocation4], 128, 128, 8
    $region41: #{tpu_custom_call.1} parent=1 // pred_fallthru
      _
    // Predicated region
    $region42: #{tpu_custom_call.1} parent=1 // pred_check
      _
    $region43: #{tpu_custom_call.1} parent=1 // pred_check_branch
      %218 = sbr.rel (0) target = $region45
    $region44: #{tpu_custom_call.1} parent=1 // pred_region
      %219 = dma.done [#allocation4], 256
    $region45: #{tpu_custom_call.1} parent=1 // pred_fallthru
      _
    %220 = vsyncpa [#allocation3], 1
    %221 = vsyncpa [#allocation6], 1
    %222 = vsyncpa [#allocation4], 1

</llo_original>
